<compile_context>
chip_gen: v7x
topology: tpu7x:2x2x1
jax: 0.10.0
libtpu: 0.0.40
codegen_flags: <defaults>
</compile_context>

<pallas_src>
import jax
import jax.numpy as jnp
from jax import lax
from jax.experimental import pallas as pl
from jax.experimental.pallas import tpu as pltpu


def _round_up(x, m):
    return ((x + m - 1) // m) * m


def edge_mlp_kernel(x_ref, batch_ref, w1_ref, uw1b_ref, w2_ref, b2_ref, out_ref):
    tile = x_ref.shape[0]
    b_pad = uw1b_ref.shape[0]

    # One-hot select of the per-graph row (u @ W1_u + b1): [tile, B_pad] bf16.
    onehot = (batch_ref[...] ==
              lax.broadcasted_iota(jnp.int32, (tile, b_pad), 1)).astype(jnp.bfloat16)

    # Fused first layer:  concat(src,dest,e) @ W1_xde  +  onehot @ (u@W1_u + b1)
    h = (jnp.dot(x_ref[...], w1_ref[...], preferred_element_type=jnp.float32)
         + jnp.dot(onehot, uw1b_ref[...], preferred_element_type=jnp.float32))
    h = jnp.maximum(h, 0.0)

    # Second layer (lane-dense padded output) + bias.
    out_ref[...] = (jnp.dot(h.astype(jnp.bfloat16), w2_ref[...],
                            preferred_element_type=jnp.float32)
                    + b2_ref[...])


def edge_model_forward(src, dest, edge_attr, u, batch, params, *, tile_e=512):
    """src/dest: [E, f_x], edge_attr: [E, f_e], u: [B, f_u], batch: [E] int."""
    E, f_x = src.shape
    f_e = edge_attr.shape[1]
    f_u = u.shape[1]
    B = u.shape[0]
    w1, b1, w2, b2 = params["w1"], params["b1"], params["w2"], params["b2"]
    hidden = w1.shape[1]
    f_e_out = w2.shape[1]
    f_cat = 2 * f_x + f_e

    # ---- tiling / padding (handles arbitrary E) -------------------------
    tile = min(_round_up(tile_e, 8), _round_up(E, 8))
    e_pad = _round_up(E, tile)
    grid = (e_pad // tile,)

    # ---- wrapper-side prep ----------------------------------------------
    # One concatenated bf16 edge stream (single DMA stream, single fused dot).
    x_cat = jnp.concatenate([src, dest, edge_attr], axis=1).astype(jnp.bfloat16)
    batch2d = batch.astype(jnp.int32).reshape(E, 1)
    if e_pad != E:
        x_cat = jnp.pad(x_cat, ((0, e_pad - E), (0, 0)))
        batch2d = jnp.pad(batch2d, ((0, e_pad - E), (0, 0)))  # pad ids -> 0 (valid)

    # Split W1 by concat order; fold (u @ W1_u + b1) into a tiny [B, H] table.
    w1_xde = w1[:f_cat].astype(jnp.bfloat16)                     # [f_cat, H]
    w1_u = w1[f_cat:]                                            # [f_u, H]
    uw1b = u.astype(jnp.float32) @ w1_u.astype(jnp.float32) + b1  # [B, H] f32
    b_pad = _round_up(B, 8)
    uw1b = jnp.pad(uw1b, ((0, b_pad - B), (0, 0))).astype(jnp.bfloat16)

    # Lane-dense output: pad second layer to a multiple of 128 lanes.
    n_pad = _round_up(max(f_e_out, 128), 128)
    w2p = jnp.pad(w2, ((0, 0), (0, n_pad - f_e_out))).astype(jnp.bfloat16)
    b2p = jnp.pad(b2, (0, n_pad - f_e_out)).reshape(1, n_pad).astype(jnp.float32)

    edge_map = lambda i: (i, 0)
    full_map = lambda i: (0, 0)

    out = pl.pallas_call(
        edge_mlp_kernel,
        out_shape=jax.ShapeDtypeStruct((e_pad, n_pad), jnp.float32),
        grid=grid,
        in_specs=[
            pl.BlockSpec((tile, f_cat), edge_map),     # concat(src,dest,e)  bf16
            pl.BlockSpec((tile, 1), edge_map),         # batch ids           i32
            pl.BlockSpec((f_cat, hidden), full_map),   # W1 (src/dest/edge rows)
            pl.BlockSpec((b_pad, hidden), full_map),   # u @ W1_u + b1
            pl.BlockSpec((hidden, n_pad), full_map),   # W2 (lane-padded)
            pl.BlockSpec((1, n_pad), full_map),        # b2 (lane-padded)
        ],
        out_specs=pl.BlockSpec((tile, n_pad), edge_map),
        compiler_params=pltpu.CompilerParams(
            dimension_semantics=("parallel",)),
    )(x_cat, batch2d, w1_xde, uw1b, w2p, b2p)

    # Slice away row / lane padding.
    return out[:E, :f_e_out]


def edge_model_reference(src, dest, edge_attr, u, batch, params):
    x = jnp.concatenate([src, dest, edge_attr, u[batch]], axis=1)
    h = jnp.maximum(x @ params["w1"] + params["b1"], 0.0)
    return h @ params["w2"] + params["b2"]


if __name__ == "__main__":
    # Small shapes consistent with the module's forward.
    E, B = 20, 2                      # E not a multiple of 8 -> exercises padding
    f_x, f_e, f_u = 8, 8, 8
    hidden, f_e_out = 32, f_e
    f_in = f_e + 2 * f_x + f_u

    key = jax.random.PRNGKey(0)
    k1, k2, k3, k4, k5, k6, k7, k8 = jax.random.split(key, 8)

    params = {
        "w1": 0.1 * jax.random.normal(k1, (f_in, hidden), jnp.float32),
        "b1": 0.1 * jax.random.normal(k2, (hidden,), jnp.float32),
        "w2": 0.1 * jax.random.normal(k3, (hidden, f_e_out), jnp.float32),
        "b2": 0.1 * jax.random.normal(k4, (f_e_out,), jnp.float32),
    }

    src = jax.random.normal(k5, (E, f_x), jnp.float32)
    dest = jax.random.normal(k6, (E, f_x), jnp.float32)
    edge_attr = jax.random.normal(k7, (E, f_e), jnp.float32)
    u = jax.random.normal(k8, (B, f_u), jnp.float32)
    batch = jnp.repeat(jnp.arange(B, dtype=jnp.int32), E // B)   # [E]

    ref = edge_model_reference(src, dest, edge_attr, u, batch, params)

    # Default large tile (clamps to padded E -> single grid step here).
    out_a = edge_model_forward(src, dest, edge_attr, u, batch, params)
    out_a = jax.block_until_ready(out_a)
    assert out_a.shape == (E, f_e_out)
    assert jnp.allclose(out_a, ref, atol=2e-2, rtol=2e-2)   # bf16 matmul tolerance

    # Small tile -> multi-step grid with a partially-padded last tile.
    out_b = edge_model_forward(src, dest, edge_attr, u, batch, params, tile_e=8)
    out_b = jax.block_until_ready(out_b)
    assert out_b.shape == (E, f_e_out)
    assert jnp.allclose(out_b, ref, atol=2e-2, rtol=2e-2)

    print("KERNEL_OK")
</pallas_src>

<mosaic_0001>
module attributes {stable_mosaic.version = 11 : i64} {
  func.func @edge_mlp_kernel(%arg0: i32, %arg1: memref<24x24xbf16, #tpu.memory_space<vmem>>, %arg2: memref<24x1xi32, #tpu.memory_space<vmem>>, %arg3: memref<24x32xbf16, #tpu.memory_space<vmem>>, %arg4: memref<8x32xbf16, #tpu.memory_space<vmem>>, %arg5: memref<32x128xbf16, #tpu.memory_space<vmem>>, %arg6: memref<1x128xf32, #tpu.memory_space<vmem>>, %arg7: memref<24x128xf32, #tpu.memory_space<vmem>>) attributes {dimension_semantics = [#tpu.dimension_semantics<parallel>], iteration_bounds = array<i64: 1>, scalar_prefetch = 0 : i64, scratch_operands = 0 : i64, tpu.core_type = #tpu.core_type<tc>, window_params = [{transform_indices = @transform_0, window_bounds = array<i64: 24, 24>}, {transform_indices = @transform_1, window_bounds = array<i64: 24, 1>}, {pipeline_mode = #tpu.pipeline_mode<synchronous>, transform_indices = @transform_2, window_bounds = array<i64: 24, 32>}, {pipeline_mode = #tpu.pipeline_mode<synchronous>, transform_indices = @transform_3, window_bounds = array<i64: 8, 32>}, {pipeline_mode = #tpu.pipeline_mode<synchronous>, transform_indices = @transform_4, window_bounds = array<i64: 32, 128>}, {pipeline_mode = #tpu.pipeline_mode<synchronous>, transform_indices = @transform_5, window_bounds = array<i64: 1, 128>}, {transform_indices = @transform_6, window_bounds = array<i64: 24, 128>}]} {
    %c0 = arith.constant 0 : index
    %c0_0 = arith.constant 0 : index
    %0 = vector.load %arg2[%c0, %c0_0] : memref<24x1xi32, #tpu.memory_space<vmem>>, vector<24x1xi32>
    %1 = tpu.iota {dimensions = array<i32: 1>} : vector<24x8xi32>
    %2 = vector.broadcast %0 : vector<24x1xi32> to vector<24x8xi32>
    %3 = arith.cmpi eq, %2, %1 : vector<24x8xi32>
    %4 = arith.extui %3 : vector<24x8xi1> to vector<24x8xi32>
    %5 = arith.sitofp %4 : vector<24x8xi32> to vector<24x8xf32>
    %6 = arith.truncf %5 : vector<24x8xf32> to vector<24x8xbf16>
    %c0_1 = arith.constant 0 : index
    %c0_2 = arith.constant 0 : index
    %7 = vector.load %arg1[%c0_1, %c0_2] : memref<24x24xbf16, #tpu.memory_space<vmem>>, vector<24x24xbf16>
    %c0_3 = arith.constant 0 : index
    %c0_4 = arith.constant 0 : index
    %8 = vector.load %arg3[%c0_3, %c0_4] : memref<24x32xbf16, #tpu.memory_space<vmem>>, vector<24x32xbf16>
    %cst = arith.constant dense<0.000000e+00> : vector<24x32xf32>
    %9 = tpu.matmul %7, %8, %cst {dimension_numbers = #tpu.dot_dimension_numbers<[1], [0], [0], [1], [0, 0, 1, 1], [], []>} : vector<24x24xbf16>, vector<24x32xbf16>, vector<24x32xf32> -> vector<24x32xf32>
    %c0_5 = arith.constant 0 : index
    %c0_6 = arith.constant 0 : index
    %10 = vector.load %arg4[%c0_5, %c0_6] : memref<8x32xbf16, #tpu.memory_space<vmem>>, vector<8x32xbf16>
    %cst_7 = arith.constant dense<0.000000e+00> : vector<24x32xf32>
    %11 = tpu.matmul %6, %10, %cst_7 {dimension_numbers = #tpu.dot_dimension_numbers<[1], [0], [0], [1], [0, 0, 1, 1], [], []>} : vector<24x8xbf16>, vector<8x32xbf16>, vector<24x32xf32> -> vector<24x32xf32>
    %12 = arith.addf %9, %11 : vector<24x32xf32>
    %cst_8 = arith.constant 0.000000e+00 : f32
    %13 = vector.broadcast %cst_8 : f32 to vector<24x32xf32>
    %14 = arith.maximumf %12, %13 : vector<24x32xf32>
    %15 = arith.truncf %14 : vector<24x32xf32> to vector<24x32xbf16>
    %c0_9 = arith.constant 0 : index
    %c0_10 = arith.constant 0 : index
    %16 = vector.load %arg5[%c0_9, %c0_10] : memref<32x128xbf16, #tpu.memory_space<vmem>>, vector<32x128xbf16>
    %cst_11 = arith.constant dense<0.000000e+00> : vector<24x128xf32>
    %17 = tpu.matmul %15, %16, %cst_11 {dimension_numbers = #tpu.dot_dimension_numbers<[1], [0], [0], [1], [0, 0, 1, 1], [], []>} : vector<24x32xbf16>, vector<32x128xbf16>, vector<24x128xf32> -> vector<24x128xf32>
    %c0_12 = arith.constant 0 : index
    %c0_13 = arith.constant 0 : index
    %18 = vector.load %arg6[%c0_12, %c0_13] : memref<1x128xf32, #tpu.memory_space<vmem>>, vector<1x128xf32>
    %19 = vector.broadcast %18 : vector<1x128xf32> to vector<24x128xf32>
    %20 = arith.addf %17, %19 : vector<24x128xf32>
    %c0_14 = arith.constant 0 : index
    %c0_15 = arith.constant 0 : index
    %21 = vector.load %arg7[%c0_14, %c0_15] : memref<24x128xf32, #tpu.memory_space<vmem>>, vector<24x128xf32>
    tpu.vector_store %arg7[%c0_14, %c0_15], %20 {strides = array<i32>} : memref<24x128xf32, #tpu.memory_space<vmem>>, vector<24x128xf32>,
    return
  }
  func.func @transform_0(%arg0: i32) -> (i32, i32) {
    %c0_i32 = arith.constant 0 : i32
    %c0_i32_0 = arith.constant 0 : i32
    return %arg0, %c0_i32 : i32, i32
  }
  func.func @transform_1(%arg0: i32) -> (i32, i32) {
    %c0_i32 = arith.constant 0 : i32
    %c0_i32_0 = arith.constant 0 : i32
    return %arg0, %c0_i32 : i32, i32
  }
  func.func @transform_2(%arg0: i32) -> (i32, i32) {
    %c0_i32 = arith.constant 0 : i32
    %c0_i32_0 = arith.constant 0 : i32
    %c0_i32_1 = arith.constant 0 : i32
    return %c0_i32, %c0_i32_0 : i32, i32
  }
  func.func @transform_3(%arg0: i32) -> (i32, i32) {
    %c0_i32 = arith.constant 0 : i32
    %c0_i32_0 = arith.constant 0 : i32
    %c0_i32_1 = arith.constant 0 : i32
    return %c0_i32, %c0_i32_0 : i32, i32
  }
  func.func @transform_4(%arg0: i32) -> (i32, i32) {
    %c0_i32 = arith.constant 0 : i32
    %c0_i32_0 = arith.constant 0 : i32
    %c0_i32_1 = arith.constant 0 : i32
    return %c0_i32, %c0_i32_0 : i32, i32
  }
  func.func @transform_5(%arg0: i32) -> (i32, i32) {
    %c0_i32 = arith.constant 0 : i32
    %c0_i32_0 = arith.constant 0 : i32
    %c0_i32_1 = arith.constant 0 : i32
    return %c0_i32, %c0_i32_0 : i32, i32
  }
  func.func @transform_6(%arg0: i32) -> (i32, i32) {
    %c0_i32 = arith.constant 0 : i32
    %c0_i32_0 = arith.constant 0 : i32
    return %arg0, %c0_i32 : i32, i32
  }
}

</mosaic_0001>

<llo_original>
// kernel: tpu_custom_call.1
$region0: #{tpu_custom_call.1}
  #allocation0 [shape = 'u32[]', space=smem, size = 0x4, offset = 0x4, fixed_abs, tag = 'smem constant byte address 0x4 - core index']
  #allocation1 [shape = 'u32[144,128]{1,0:T(1,128)}', space=vmem, size = 0x12000, scoped, tag = 'internal scratch']
  %s0 = inlined_call_operand.vmem [shape: bf16[24,24], index: 0, kind: input, shape index: {}]
  %s1 = inlined_call_operand.vmem [shape: s32[24,1], index: 1, kind: input, shape index: {}]
  %s2 = inlined_call_operand.hbm [shape: bf16[24,32], index: 2, kind: input, shape index: {}]
  %s3 = inlined_call_operand.vmem [shape: bf16[8,32], index: 3, kind: input, shape index: {}]
  %s4 = inlined_call_operand.vmem [shape: bf16[32,128], index: 4, kind: input, shape index: {}]
  %s5 = inlined_call_operand.vmem [shape: f32[1,128], index: 5, kind: input, shape index: {}]
  %s6 = inlined_call_operand.hbm [shape: f32[24,128], index: 6, kind: output, shape index: {}]
  %s7 = sld [smem:[#allocation0]]
  $region38: #{tpu_custom_call.1} parent=0
    _
  %s9 = ssub.s32 1, %s7
  %s10 = scalar_select 0, %s9, %s7
  $region1: #{tpu_custom_call.1} parent=0
    #allocation2 [shape = 'u8[6144]{0}', space=vmem, size = 0x1800, scoped, tag = 'input window, operand 2, single buffered']
    #allocation3 [shape = 's32[1]{0}', space=sflag, size = 0x4, scoped, tag = 'scoped memory for tpu_custom_call.1']
    #allocation4 [shape = 's32[1]{0}', space=sflag, size = 0x4, scoped, tag = 'scoped memory for tpu_custom_call.1']
    #allocation5 [shape = 'u8[12288]{0}', space=vmem, size = 0x3000, scoped, tag = 'output window, operand 0, single buffered']
    %11 = vsyncpa [#allocation3], 0
    %12 = vsyncpa [#allocation4], 0
    // Predicated region
    $region2: #{tpu_custom_call.1} parent=1 // pred_check
      _
    $region3: #{tpu_custom_call.1} parent=1 // pred_check_branch
      %14 = sbr.rel (0) target = $region5
    $region4: #{tpu_custom_call.1} parent=1 // pred_region
      _
    $region5: #{tpu_custom_call.1} parent=1 // pred_fallthru
      _
    // Predicated region
    $region6: #{tpu_custom_call.1} parent=1 // pred_check
      _
    $region7: #{tpu_custom_call.1} parent=1 // pred_check_branch
      %16 = sbr.rel (0) target = $region9
    $region8: #{tpu_custom_call.1} parent=1 // pred_region
      _
    $region9: #{tpu_custom_call.1} parent=1 // pred_fallthru
      _
    // Predicated region
    $region10: #{tpu_custom_call.1} parent=1 // pred_check
      _
    $region11: #{tpu_custom_call.1} parent=1 // pred_check_branch
      %18 = sbr.rel (0) target = $region13
    $region12: #{tpu_custom_call.1} parent=1 // pred_region
      %s20 = ssub.s32 192, 192
      %21 = vsyncadd [#allocation3], %s20
      %s22 = sshll.u32 [#allocation2], 4
      %s23 = int_to_ptr.vmem [resolvable:$true] %s22
      %28 = dma.hbm_to_vmem [thread:$0]  %s2, 192, %s23, [#allocation3], 64, 64, 4
    $region13: #{tpu_custom_call.1} parent=1 // pred_fallthru
      _
    // Predicated region
    $region14: #{tpu_custom_call.1} parent=1 // pred_check
      _
    $region15: #{tpu_custom_call.1} parent=1 // pred_check_branch
      %30 = sbr.rel (0) target = $region17
    $region16: #{tpu_custom_call.1} parent=1 // pred_region
      _
    $region17: #{tpu_custom_call.1} parent=1 // pred_fallthru
      _
    // Predicated region
    $region18: #{tpu_custom_call.1} parent=1 // pred_check
      _
    $region19: #{tpu_custom_call.1} parent=1 // pred_check_branch
      %32 = sbr.rel (0) target = $region21
    $region20: #{tpu_custom_call.1} parent=1 // pred_region
      _
    $region21: #{tpu_custom_call.1} parent=1 // pred_fallthru
      _
    // Predicated region
    $region22: #{tpu_custom_call.1} parent=1 // pred_check
      _
    $region23: #{tpu_custom_call.1} parent=1 // pred_check_branch
      %34 = sbr.rel (0) target = $region25
    $region24: #{tpu_custom_call.1} parent=1 // pred_region
      _
    $region25: #{tpu_custom_call.1} parent=1 // pred_fallthru
      _
    // Predicated region
    $region26: #{tpu_custom_call.1} parent=1 // pred_check
      _
    $region27: #{tpu_custom_call.1} parent=1 // pred_check_branch
      %36 = sbr.rel (0) target = $region29
    $region28: #{tpu_custom_call.1} parent=1 // pred_region
      %37 = dma.done [#allocation3], 192
    $region29: #{tpu_custom_call.1} parent=1 // pred_fallthru
      _
    %v39 = vld [vmem:[%s1] sm:$0xff]
    %v40 = vld [vmem:[%s1 + $0x8] sm:$0xff]
    %v41 = vld [vmem:[%s1 + $0x10] sm:$0xff]
    %v42 = vlaneseq
    %v43 = vand.u32 %v42, 127
    %44 = vset.pattern.permute.xlu0 0
    %45 = vperm.xlu0 %44, %v39
    %v46 = vpop.permute.xlu0 %45
    %47 = vset.pattern.permute.xlu0 0
    %48 = vperm.xlu0 %47, %v40
    %v49 = vpop.permute.xlu0 %48
    %50 = vset.pattern.permute.xlu0 0
    %51 = vperm.xlu0 %50, %v41
    %v52 = vpop.permute.xlu0 %51
    %vm53 = vcmp.eq.s32.totalorder %v46, %v43
    %vm54 = vcmp.eq.s32.totalorder %v49, %v43
    %vm55 = vcmp.eq.s32.totalorder %v52, %v43
    %v56 = vsel %vm53, 1, 0
    %v57 = vsel %vm54, 1, 0
    %v58 = vsel %vm55, 1, 0
    %v59 = vcvt.s32.f32 %v56
    %v60 = vcvt.s32.f32 %v57
    %v61 = vcvt.s32.f32 %v58
    %v62 = vpack.c.bf16 %v60, %v59
    %v63 = vpack.c.bf16 %v61, %v61
    %v64 = vld [vmem:[%s0] sm:$0xf]
    %v65 = vld [vmem:[%s0 + $0x4] sm:$0xf]
    %v66 = vld [vmem:[%s0 + $0x8] sm:$0xf]
    %v67 = vld [vmem:[#allocation2] sm:$0xf]
    %v68 = vld [vmem:[#allocation2 + $0x4] sm:$0xf]
    %v69 = vld [vmem:[#allocation2 + $0x8] sm:$0xf]
    %v70 = vld [vmem:[%s3] sm:$0xf]
    %vm71 = vcmask 64512
    %v73 = vsel %vm71, %v62, 0
    %v76 = vsel %vm71, %v63, 0
    %vm78 = vcmask 1043456
    %v80 = vsel %vm78, %v70, 0
    %82 = vmatprep.subr.bf16.mxu0 0
    %83 = vmatpush1.bf16.msra.mxu0 %v80
    %84 = vmatprep.subr.bf16.mxu0 0
    %85 = vmatpush1.bf16.msra.mxu0 0
    %86 = vmatprep.subr.bf16.mxu0 0
    %87 = vmatpush1.bf16.msra.mxu0 0
    %88 = vmatprep.subr.bf16.mxu0 0
    %89 = vmatpush1.bf16.msra.mxu0 0
    %90 = vmatprep.subr.bf16.mxu0 0
    %91 = vmatpush1.bf16.msra.mxu0 0
    %92 = vmatprep.subr.bf16.mxu0 0
    %93 = vmatpush1.bf16.msra.mxu0 0
    %94 = vmatprep.subr.bf16.mxu0 0
    %95 = vmatpush1.bf16.msra.mxu0 0
    %96 = vmatprep.subr.bf16.mxu0 0
    %97 = vmatpush1.bf16.msra.mxu0 0
    %98 = vmatprep.subr.bf16.mxu0 0
    %99 = vmatpush1.bf16.msra.mxu0 0
    %100 = vmatprep.subr.bf16.mxu0 0
    %101 = vmatpush1.bf16.msra.mxu0 0
    %102 = vmatprep.subr.bf16.mxu0 0
    %103 = vmatpush1.bf16.msra.mxu0 0
    %104 = vmatprep.subr.bf16.mxu0 0
    %105 = vmatpush1.bf16.msra.mxu0 0
    %106 = vmatprep.subr.bf16.mxu0 0
    %107 = vmatpush1.bf16.msra.mxu0 0
    %108 = vmatprep.subr.bf16.mxu0 0
    %109 = vmatpush1.bf16.msra.mxu0 0
    %110 = vmatprep.subr.bf16.mxu0 0
    %111 = vmatpush1.bf16.msra.mxu0 0
    %112 = vmatprep.subr.bf16.mxu0 0
    %113 = vmatpush1.bf16.msra.mxu0 0
    %114 = vmatprep.mubr.bf16.mxu0 0
    %115 = vmatmul.mubr.bf16.gmra.mrb[0].mxu0 %v73
    %v116 = vpop.f32.mrb[0].mxu0
    %v117 = vadd.f32 0.0, %v116
    %v118 = vpop.f32.mrb[0].mxu0
    %v119 = vpop.f32.mrb[0].mxu0
    %v120 = vadd.f32 0.0, %v119
    %v121 = vpop.f32.mrb[0].mxu0
    %122 = vmatprep.mubr.bf16.mxu0 0
    %123 = vmatmul.mubr.bf16.gmra.mrb[0].mxu0 %v76
    %v124 = vpop.f32.mrb[0].mxu0
    %v125 = vadd.f32 0.0, %v124
    %v126 = vpop.f32.mrb[0].mxu0
    %v127 = vpop.f32.mrb[0].mxu0
    %v128 = vpop.f32.mrb[0].mxu0
    %129 = vdwg.mxu0
    %v133 = vunpack.c.l.b16 %v64
    %v134 = vunpack.c.l.b16 %v65
    %v135 = vunpack.c.l.b16 %v66
    %v136 = vpack.c.b16 %v134, %v133
    %v137 = vpack.c.b16 %v135, %v135
    %v141 = vunpack.c.l.b16 %v67
    %v142 = vunpack.c.l.b16 %v68
    %v143 = vunpack.c.l.b16 %v69
    %v144 = vpack.c.b16 %v142, %v141
    %v145 = vpack.c.b16 %v143, %v143
    %vm147 = vcmask 195584
    %v149 = vsel %vm147, %v136, 0
    %v152 = vsel %vm147, %v137, 0
    %v155 = vsel %vm78, %v145, 0
    %157 = vmatprep.subr.bf16.mxu0 0
    %158 = vmatpush1.bf16.msra.mxu0 %v144
    %159 = vmatprep.subr.bf16.mxu0 0
    %160 = vmatpush1.bf16.msra.mxu0 %v155
    %161 = vmatprep.subr.bf16.mxu0 0
    %162 = vmatpush1.bf16.msra.mxu0 0
    %163 = vmatprep.subr.bf16.mxu0 0
    %164 = vmatpush1.bf16.msra.mxu0 0
    %165 = vmatprep.subr.bf16.mxu0 0
    %166 = vmatpush1.bf16.msra.mxu0 0
    %167 = vmatprep.subr.bf16.mxu0 0
    %168 = vmatpush1.bf16.msra.mxu0 0
    %169 = vmatprep.subr.bf16.mxu0 0
    %170 = vmatpush1.bf16.msra.mxu0 0
    %171 = vmatprep.subr.bf16.mxu0 0
    %172 = vmatpush1.bf16.msra.mxu0 0
    %173 = vmatprep.subr.bf16.mxu0 0
    %174 = vmatpush1.bf16.msra.mxu0 0
    %175 = vmatprep.subr.bf16.mxu0 0
    %176 = vmatpush1.bf16.msra.mxu0 0
    %177 = vmatprep.subr.bf16.mxu0 0
    %178 = vmatpush1.bf16.msra.mxu0 0
    %179 = vmatprep.subr.bf16.mxu0 0
    %180 = vmatpush1.bf16.msra.mxu0 0
    %181 = vmatprep.subr.bf16.mxu0 0
    %182 = vmatpush1.bf16.msra.mxu0 0
    %183 = vmatprep.subr.bf16.mxu0 0
    %184 = vmatpush1.bf16.msra.mxu0 0
    %185 = vmatprep.subr.bf16.mxu0 0
    %186 = vmatpush1.bf16.msra.mxu0 0
    %187 = vmatprep.subr.bf16.mxu0 0
    %188 = vmatpush1.bf16.msra.mxu0 0
    %189 = vmatprep.mubr.bf16.mxu0 0
    %190 = vmatmul.mubr.bf16.gmra.mrb[0].mxu0 %v149
    %v191 = vpop.f32.mrb[0].mxu0
    %v192 = vadd.f32 %v117, %v191
    %v193 = vpop.f32.mrb[0].mxu0
    %v194 = vpop.f32.mrb[0].mxu0
    %v195 = vadd.f32 %v120, %v194
    %v196 = vpop.f32.mrb[0].mxu0
    %197 = vmatprep.mubr.bf16.mxu0 0
    %198 = vmatmul.mubr.bf16.gmra.mrb[0].mxu0 %v152
    %v199 = vpop.f32.mrb[0].mxu0
    %v200 = vadd.f32 %v125, %v199
    %v201 = vpop.f32.mrb[0].mxu0
    %v202 = vpop.f32.mrb[0].mxu0
    %v203 = vpop.f32.mrb[0].mxu0
    %204 = vdwg.mxu0
    %v205 = vmax.f32 %v192, 0.0
    %v206 = vmax.f32 %v195, 0.0
    %v207 = vmax.f32 %v200, 0.0
    %v208 = vpack.c.bf16 %v206, %v205
    %v209 = vpack.c.bf16 %v207, %v207
    %v210 = vld [vmem:[%s4] sm:$0xf]
    %v211 = vld [vmem:[%s4 + $0x4] sm:$0xf]
    %v212 = vld [vmem:[%s4 + $0x8] sm:$0xf]
    %v213 = vld [vmem:[%s4 + $0xc] sm:$0xf]
    %v214 = vld [vmem:[%s5] sm:$0x1]
    %v216 = vlaneseq
    %v217 = vshrl.u32 %v216, 7
    %v218 = vsub.s32 0, %v217
    %v219 = vrot.slane %v214, %v218
    %v225 = vunpack.c.l.b16 %v210
    %v226 = vunpack.c.l.b16 %v211
    %v227 = vunpack.c.l.b16 %v212
    %v228 = vunpack.c.l.b16 %v213
    %v229 = vpack.c.b16 %v226, %v225
    %v230 = vpack.c.b16 %v228, %v227
    %vm233 = vcmask 261120
    %v235 = vsel %vm233, %v208, 0
    %v238 = vsel %vm233, %v209, 0
    %240 = vmatprep.subr.bf16.mxu0 0
    %241 = vmatpush1.bf16.msra.mxu0 %v229
    %242 = vmatprep.subr.bf16.mxu0 0
    %243 = vmatpush1.bf16.msra.mxu0 %v230
    %244 = vmatprep.subr.bf16.mxu0 0
    %245 = vmatpush1.bf16.msra.mxu0 0
    %246 = vmatprep.subr.bf16.mxu0 0
    %247 = vmatpush1.bf16.msra.mxu0 0
    %248 = vmatprep.subr.bf16.mxu0 0
    %249 = vmatpush1.bf16.msra.mxu0 0
    %250 = vmatprep.subr.bf16.mxu0 0
    %251 = vmatpush1.bf16.msra.mxu0 0
    %252 = vmatprep.subr.bf16.mxu0 0
    %253 = vmatpush1.bf16.msra.mxu0 0
    %254 = vmatprep.subr.bf16.mxu0 0
    %255 = vmatpush1.bf16.msra.mxu0 0
    %256 = vmatprep.subr.bf16.mxu0 0
    %257 = vmatpush1.bf16.msra.mxu0 0
    %258 = vmatprep.subr.bf16.mxu0 0
    %259 = vmatpush1.bf16.msra.mxu0 0
    %260 = vmatprep.subr.bf16.mxu0 0
    %261 = vmatpush1.bf16.msra.mxu0 0
    %262 = vmatprep.subr.bf16.mxu0 0
    %263 = vmatpush1.bf16.msra.mxu0 0
    %264 = vmatprep.subr.bf16.mxu0 0
    %265 = vmatpush1.bf16.msra.mxu0 0
    %266 = vmatprep.subr.bf16.mxu0 0
    %267 = vmatpush1.bf16.msra.mxu0 0
    %268 = vmatprep.subr.bf16.mxu0 0
    %269 = vmatpush1.bf16.msra.mxu0 0
    %270 = vmatprep.subr.bf16.mxu0 0
    %271 = vmatpush1.bf16.msra.mxu0 0
    %272 = vmatprep.mubr.bf16.mxu0 0
    %273 = vmatmul.mubr.bf16.gmra.mrb[0].mxu0 %v235
    %v274 = vpop.f32.mrb[0].mxu0
    %v275 = vadd.f32 %v219, %v274
    %v276 = vpop.f32.mrb[0].mxu0
    %v277 = vpop.f32.mrb[0].mxu0
    %v278 = vadd.f32 %v219, %v277
    %v279 = vpop.f32.mrb[0].mxu0
    %280 = vmatprep.mubr.bf16.mxu0 0
    %281 = vmatmul.mubr.bf16.gmra.mrb[0].mxu0 %v238
    %v282 = vpop.f32.mrb[0].mxu0
    %v283 = vadd.f32 %v219, %v282
    %v284 = vpop.f32.mrb[0].mxu0
    %v285 = vpop.f32.mrb[0].mxu0
    %v286 = vpop.f32.mrb[0].mxu0
    %287 = vdwg.mxu0
    %288 = vst [vmem:[#allocation5] sm:$0xff] %v275
    %289 = vst [vmem:[#allocation5 + $0x8] sm:$0xff] %v278
    %290 = vst [vmem:[#allocation5 + $0x10] sm:$0xff] %v283
    // Predicated region
    $region30: #{tpu_custom_call.1} parent=1 // pred_check
      _
    $region31: #{tpu_custom_call.1} parent=1 // pred_check_branch
      %292 = sbr.rel (0) target = $region33
    $region32: #{tpu_custom_call.1} parent=1 // pred_region
      %s294 = ssub.s32 384, 384
      %295 = vsyncadd [#allocation4], %s294
      %s296 = sshll.u32 [#allocation5], 4
      %s297 = int_to_ptr.vmem [resolvable:$true] %s296
      %302 = dma.vmem_to_hbm [thread:$0]  %s297, 384, %s6, [#allocation4], 128, 128, 8
    $region33: #{tpu_custom_call.1} parent=1 // pred_fallthru
      _
    // Predicated region
    $region34: #{tpu_custom_call.1} parent=1 // pred_check
      _
    $region35: #{tpu_custom_call.1} parent=1 // pred_check_branch
      %304 = sbr.rel (0) target = $region37
    $region36: #{tpu_custom_call.1} parent=1 // pred_region
      %305 = dma.done [#allocation4], 384
    $region37: #{tpu_custom_call.1} parent=1 // pred_fallthru
      _
    %306 = vsyncpa [#allocation3], 1
    %307 = vsyncpa [#allocation4], 1

</llo_original>
